<compile_context>
chip_gen: v7x
topology: tpu7x:2x2x1
jax: 0.10.0
libtpu: 0.0.40
codegen_flags: <defaults>
</compile_context>

<pallas_src>
import jax
import jax.numpy as jnp
from jax.experimental import pallas as pl
from jax.experimental.pallas import tpu as pltpu

LATDIM = 32   # args.latdim
LEAKY = 0.5   # args.leaky
PACK = 4      # 4 * 32 = 128 -> one full vreg lane width


def _lrelu(x):
    return jnp.where(x >= 0, x, LEAKY * x)


# ---------------------------------------------------------------------------
# Meta kernel (single launch for BOTH hyper sets): mean over hyper rows + the
# two meta linears that generate the per-(user|item) mapping weights W1
# (flattened) and bias b1.  M=1 matmuls -> negligible cost; kept separate only
# because reshaping the flat W1 and block-diagonalizing it is host-side glue.
# ---------------------------------------------------------------------------
def meta_kernel(uh_ref, ih_ref, wm1_ref, bm1_ref, wm2_ref, bm2_ref,
                w1u_ref, b1u_ref, w1i_ref, b1i_ref):
    wm1 = wm1_ref[...]
    bm1 = bm1_ref[...]
    wm2 = wm2_ref[...]
    bm2 = bm2_ref[...]

    uhm = jnp.mean(uh_ref[...], axis=0, keepdims=True)              # [1, D]
    ihm = jnp.mean(ih_ref[...], axis=0, keepdims=True)              # [1, D]

    w1u_ref[...] = jnp.dot(uhm, wm1, preferred_element_type=jnp.float32) + bm1
    b1u_ref[...] = jnp.dot(uhm, wm2, preferred_element_type=jnp.float32) + bm2
    w1i_ref[...] = jnp.dot(ihm, wm1, preferred_element_type=jnp.float32) + bm1
    b1i_ref[...] = jnp.dot(ihm, wm2, preferred_element_type=jnp.float32) + bm2


def run_meta(uHyper, iHyper, p):
    D = LATDIM
    w1u_flat, b1u, w1i_flat, b1i = pl.pallas_call(
        meta_kernel,
        out_shape=(jax.ShapeDtypeStruct((1, D * D), jnp.float32),
                   jax.ShapeDtypeStruct((1, D), jnp.float32),
                   jax.ShapeDtypeStruct((1, D * D), jnp.float32),
                   jax.ShapeDtypeStruct((1, D), jnp.float32)),
    )(uHyper, iHyper, p['wm1'], p['bm1'], p['wm2'], p['bm2'])
    # reshape of the generated (32,32) weight matrices is pure XLA glue
    return w1u_flat.reshape(D, D), b1u, w1i_flat.reshape(D, D), b1i


# ---------------------------------------------------------------------------
# LabelNetwork hot path, fully lane-packed (4 original rows per packed row):
#   ulat/ilat : [tm,128] @ [128,128] block-diag mapping, +bias, leakyrelu
#   stage 2   : lane-concat -> ONE [tm,256] @ [256,128] fused matmul
#   residual  : + ulat + ilat
#   project   : [tm,128] @ [128,4] block matmul, + bl2 (SMEM scalar), sigmoid
# tm below is in PACKED rows (= 4 original rows each).
# ---------------------------------------------------------------------------
def label_kernel(uk_ref, ik_ref, w1u_ref, b1u_ref, w1i_ref, b1i_ref,
                 wl1_ref, bl1_ref, w2_ref, bl2_ref, out_ref):
    ulat = _lrelu(jnp.dot(uk_ref[...], w1u_ref[...],
                          preferred_element_type=jnp.float32) + b1u_ref[...])
    ilat = _lrelu(jnp.dot(ik_ref[...], w1i_ref[...],
                          preferred_element_type=jnp.float32) + b1i_ref[...])
    # cat(ulat, ilat) along lanes (both 128-lane aligned) -> one K=256 matmul
    cat = jnp.concatenate([ulat, ilat], axis=-1)                     # [tm,256]
    lat = _lrelu(jnp.dot(cat, wl1_ref[...],
                         preferred_element_type=jnp.float32)
                 + bl1_ref[...]) + ulat + ilat                       # [tm,128]
    # block-diag final projection: 4 logits per packed row
    logit = jnp.dot(lat, w2_ref[...],
                    preferred_element_type=jnp.float32) + bl2_ref[0, 0]
    out_ref[...] = jax.nn.sigmoid(logit)                             # [tm,4]


def _choose_tm_pk(npk):
    # npk = number of PACKED rows (each = 4 original rows).
    # 1024 packed rows keeps the working set (2 key tiles x2 buffers, out x2,
    # block-diag weights, intermediates) around ~8 MiB -> under the scoped
    # VMEM default on v5e (16 MiB) / v6e / v7x (32 MiB).  cdiv(npk,4) keeps
    # >= 4 grid steps for large N so each v7x TensorCore gets >= 2 pipelined
    # steps (and the 1-TC chips still get DMA/compute overlap).
    if npk <= 8:
        return npk                         # single full-extent block
    tm = min(1024, pl.cdiv(npk, 4))
    return max(8, (tm // 8) * 8)           # sublane granularity


def label_network(usrKey, itmKey, uHyper, iHyper, p):
    D = LATDIM
    N = usrKey.shape[0]

    # shared Meta module applied to each hyper set (same weights), one launch
    w1u, b1u, w1i, b1i = run_meta(uHyper, iHyper, p)

    # --- host-side weight plumbing: expand to 4x block-diagonal (<=128 KiB) ---
    eye4 = jnp.eye(PACK, dtype=jnp.float32)
    w1u_blk = jnp.kron(eye4, w1u)                                    # (128,128)
    w1i_blk = jnp.kron(eye4, w1i)                                    # (128,128)
    b1u_t = jnp.tile(b1u, (1, PACK))                                 # (1,128)
    b1i_t = jnp.tile(b1i, (1, PACK))                                 # (1,128)
    wl1_f = jnp.concatenate([jnp.kron(eye4, p['wl1'][:D, :]),        # ulat half
                             jnp.kron(eye4, p['wl1'][D:, :])],       # ilat half
                            axis=0)                                  # (256,128)
    bl1_t = jnp.tile(p['bl1'], (1, PACK))                            # (1,128)
    w2_blk = jnp.kron(eye4, p['wl2'])                                # (128,4)

    # --- pack the row axis: (N,32) -> (N/4,128), free contiguous view ---
    if N % PACK != 0:
        pad = PACK - N % PACK              # <=3 rows, only when N % 4 != 0
        usrKey = jnp.pad(usrKey, ((0, pad), (0, 0)))
        itmKey = jnp.pad(itmKey, ((0, pad), (0, 0)))
    npk = usrKey.shape[0] // PACK
    uk = usrKey.reshape(npk, PACK * D)
    ik = itmKey.reshape(npk, PACK * D)

    tm = _choose_tm_pk(npk)
    grid = (pl.cdiv(npk, tm),)             # ragged last block handled by Pallas

    const = lambda i: (0, 0)
    out = pl.pallas_call(
        label_kernel,
        out_shape=jax.ShapeDtypeStruct((npk, PACK), jnp.float32),
        grid=grid,
        in_specs=[
            pl.BlockSpec((tm, PACK * D), lambda i: (i, 0)),     # usrKey packed
            pl.BlockSpec((tm, PACK * D), lambda i: (i, 0)),     # itmKey packed
            pl.BlockSpec((PACK * D, PACK * D), const),          # W1u block-diag
            pl.BlockSpec((1, PACK * D), const),                 # b1u tiled
            pl.BlockSpec((PACK * D, PACK * D), const),          # W1i block-diag
            pl.BlockSpec((1, PACK * D), const),                 # b1i tiled
            pl.BlockSpec((2 * PACK * D, PACK * D), const),      # fused Wl1
            pl.BlockSpec((1, PACK * D), const),                 # bl1 tiled
            pl.BlockSpec((PACK * D, PACK), const),              # wl2 block-diag
            pl.BlockSpec(memory_space=pltpu.MemorySpace.SMEM),  # bl2 scalar
        ],
        out_specs=pl.BlockSpec((tm, PACK), lambda i: (i, 0)),
        compiler_params=pltpu.CompilerParams(
            dimension_semantics=("parallel",),
            vmem_limit_bytes=32 * 1024 * 1024),
    )(uk, ik, w1u_blk, b1u_t, w1i_blk, b1i_t, wl1_f, bl1_t, w2_blk, p['bl2'])

    # packed (npk,4) row-major == original row order
    return out.reshape(-1)[:N]


# ---------------------------------------------------------------------------
# Pure-JAX reference for validation
# ---------------------------------------------------------------------------
def reference(usrKey, itmKey, uHyper, iHyper, p):
    D = LATDIM

    def meta(hyper):
        hm = jnp.mean(hyper, axis=0, keepdims=True)
        W1 = (hm @ p['wm1'] + p['bm1']).reshape(D, D)
        b1 = hm @ p['wm2'] + p['bm2']
        return W1, b1

    W1u, b1u = meta(uHyper)
    W1i, b1i = meta(iHyper)
    ulat = _lrelu(usrKey @ W1u + b1u)
    ilat = _lrelu(itmKey @ W1i + b1i)
    lat = jnp.concatenate([ulat, ilat], axis=-1)
    lat = _lrelu(lat @ p['wl1'] + p['bl1']) + ulat + ilat
    return jax.nn.sigmoid(lat @ p['wl2'] + p['bl2']).reshape(-1)


def init_params(key):
    D = LATDIM
    ks = jax.random.split(key, 8)
    s = 0.1
    return {
        'wm1': s * jax.random.normal(ks[0], (D, D * D), jnp.float32),
        'bm1': s * jax.random.normal(ks[1], (1, D * D), jnp.float32),
        'wm2': s * jax.random.normal(ks[2], (D, D), jnp.float32),
        'bm2': s * jax.random.normal(ks[3], (1, D), jnp.float32),
        'wl1': s * jax.random.normal(ks[4], (2 * D, D), jnp.float32),
        'bl1': s * jax.random.normal(ks[5], (1, D), jnp.float32),
        'wl2': s * jax.random.normal(ks[6], (D, 1), jnp.float32),
        'bl2': s * jax.random.normal(ks[7], (1, 1), jnp.float32),
    }


if __name__ == "__main__":
    D = LATDIM
    N, Hu, Hi = 16, 8, 6
    root = jax.random.PRNGKey(0)
    kp, k1, k2, k3, k4 = jax.random.split(root, 5)

    params = init_params(kp)
    usrKey = jax.random.normal(k1, (N, D), jnp.float32)
    itmKey = jax.random.normal(k2, (N, D), jnp.float32)
    uHyper = jax.random.normal(k3, (Hu, D), jnp.float32)
    iHyper = jax.random.normal(k4, (Hi, D), jnp.float32)

    out = jax.block_until_ready(
        label_network(usrKey, itmKey, uHyper, iHyper, params))
    ref = jax.block_until_ready(
        reference(usrKey, itmKey, uHyper, iHyper, params))

    assert out.shape == (N,)
    assert jnp.allclose(out, ref, atol=1e-5, rtol=1e-5), (out, ref)
    print("KERNEL_OK")
</pallas_src>

<mosaic_0001>
module attributes {stable_mosaic.version = 11 : i64} {
  func.func @meta_kernel(%arg0: memref<8x32xf32, #tpu.memory_space<vmem>>, %arg1: memref<6x32xf32, #tpu.memory_space<vmem>>, %arg2: memref<32x1024xf32, #tpu.memory_space<vmem>>, %arg3: memref<1x1024xf32, #tpu.memory_space<vmem>>, %arg4: memref<32x32xf32, #tpu.memory_space<vmem>>, %arg5: memref<1x32xf32, #tpu.memory_space<vmem>>, %arg6: memref<1x1024xf32, #tpu.memory_space<vmem>>, %arg7: memref<1x32xf32, #tpu.memory_space<vmem>>, %arg8: memref<1x1024xf32, #tpu.memory_space<vmem>>, %arg9: memref<1x32xf32, #tpu.memory_space<vmem>>) attributes {dimension_semantics = [], scalar_prefetch = 0 : i64, scratch_operands = 0 : i64, tpu.core_type = #tpu.core_type<tc>} {
    %c0 = arith.constant 0 : index
    %c0_0 = arith.constant 0 : index
    %0 = vector.load %arg2[%c0, %c0_0] : memref<32x1024xf32, #tpu.memory_space<vmem>>, vector<32x1024xf32>
    %c0_1 = arith.constant 0 : index
    %c0_2 = arith.constant 0 : index
    %1 = vector.load %arg3[%c0_1, %c0_2] : memref<1x1024xf32, #tpu.memory_space<vmem>>, vector<1x1024xf32>
    %c0_3 = arith.constant 0 : index
    %c0_4 = arith.constant 0 : index
    %2 = vector.load %arg4[%c0_3, %c0_4] : memref<32x32xf32, #tpu.memory_space<vmem>>, vector<32x32xf32>
    %c0_5 = arith.constant 0 : index
    %c0_6 = arith.constant 0 : index
    %3 = vector.load %arg5[%c0_5, %c0_6] : memref<1x32xf32, #tpu.memory_space<vmem>>, vector<1x32xf32>
    %c0_7 = arith.constant 0 : index
    %c0_8 = arith.constant 0 : index
    %4 = vector.load %arg0[%c0_7, %c0_8] : memref<8x32xf32, #tpu.memory_space<vmem>>, vector<8x32xf32>
    %cst = arith.constant dense<0.000000e+00> : vector<32xf32>
    %5 = vector.multi_reduction <add>, %4, %cst [0] : vector<8x32xf32> to vector<32xf32>
    %6 = vector.shape_cast %5 : vector<32xf32> to vector<1x32xf32>
    %cst_9 = arith.constant 8.000000e+00 : f32
    %7 = vector.broadcast %cst_9 : f32 to vector<1x32xf32>
    %8 = arith.divf %6, %7 : vector<1x32xf32>
    %c0_10 = arith.constant 0 : index
    %c0_11 = arith.constant 0 : index
    %9 = vector.load %arg1[%c0_10, %c0_11] : memref<6x32xf32, #tpu.memory_space<vmem>>, vector<6x32xf32>
    %cst_12 = arith.constant dense<0.000000e+00> : vector<32xf32>
    %10 = vector.multi_reduction <add>, %9, %cst_12 [0] : vector<6x32xf32> to vector<32xf32>
    %11 = vector.shape_cast %10 : vector<32xf32> to vector<1x32xf32>
    %cst_13 = arith.constant 6.000000e+00 : f32
    %12 = vector.broadcast %cst_13 : f32 to vector<1x32xf32>
    %13 = arith.divf %11, %12 : vector<1x32xf32>
    %cst_14 = arith.constant dense<0.000000e+00> : vector<1x1024xf32>
    %14 = tpu.matmul %8, %0, %cst_14 {dimension_numbers = #tpu.dot_dimension_numbers<[1], [0], [0], [1], [0, 0, 1, 1], [], []>} : vector<1x32xf32>, vector<32x1024xf32>, vector<1x1024xf32> -> vector<1x1024xf32>
    %15 = arith.addf %14, %1 : vector<1x1024xf32>
    %c0_15 = arith.constant 0 : index
    %c0_16 = arith.constant 0 : index
    %16 = vector.load %arg6[%c0_15, %c0_16] : memref<1x1024xf32, #tpu.memory_space<vmem>>, vector<1x1024xf32>
    tpu.vector_store %arg6[%c0_15, %c0_16], %15 {strides = array<i32>} : memref<1x1024xf32, #tpu.memory_space<vmem>>, vector<1x1024xf32>,
    %cst_17 = arith.constant dense<0.000000e+00> : vector<1x32xf32>
    %17 = tpu.matmul %8, %2, %cst_17 {dimension_numbers = #tpu.dot_dimension_numbers<[1], [0], [0], [1], [0, 0, 1, 1], [], []>} : vector<1x32xf32>, vector<32x32xf32>, vector<1x32xf32> -> vector<1x32xf32>
    %18 = arith.addf %17, %3 : vector<1x32xf32>
    %c0_18 = arith.constant 0 : index
    %c0_19 = arith.constant 0 : index
    %19 = vector.load %arg7[%c0_18, %c0_19] : memref<1x32xf32, #tpu.memory_space<vmem>>, vector<1x32xf32>
    tpu.vector_store %arg7[%c0_18, %c0_19], %18 {strides = array<i32>} : memref<1x32xf32, #tpu.memory_space<vmem>>, vector<1x32xf32>,
    %cst_20 = arith.constant dense<0.000000e+00> : vector<1x1024xf32>
    %20 = tpu.matmul %13, %0, %cst_20 {dimension_numbers = #tpu.dot_dimension_numbers<[1], [0], [0], [1], [0, 0, 1, 1], [], []>} : vector<1x32xf32>, vector<32x1024xf32>, vector<1x1024xf32> -> vector<1x1024xf32>
    %21 = arith.addf %20, %1 : vector<1x1024xf32>
    %c0_21 = arith.constant 0 : index
    %c0_22 = arith.constant 0 : index
    %22 = vector.load %arg8[%c0_21, %c0_22] : memref<1x1024xf32, #tpu.memory_space<vmem>>, vector<1x1024xf32>
    tpu.vector_store %arg8[%c0_21, %c0_22], %21 {strides = array<i32>} : memref<1x1024xf32, #tpu.memory_space<vmem>>, vector<1x1024xf32>,
    %cst_23 = arith.constant dense<0.000000e+00> : vector<1x32xf32>
    %23 = tpu.matmul %13, %2, %cst_23 {dimension_numbers = #tpu.dot_dimension_numbers<[1], [0], [0], [1], [0, 0, 1, 1], [], []>} : vector<1x32xf32>, vector<32x32xf32>, vector<1x32xf32> -> vector<1x32xf32>
    %24 = arith.addf %23, %3 : vector<1x32xf32>
    %c0_24 = arith.constant 0 : index
    %c0_25 = arith.constant 0 : index
    %25 = vector.load %arg9[%c0_24, %c0_25] : memref<1x32xf32, #tpu.memory_space<vmem>>, vector<1x32xf32>
    tpu.vector_store %arg9[%c0_24, %c0_25], %24 {strides = array<i32>} : memref<1x32xf32, #tpu.memory_space<vmem>>, vector<1x32xf32>,
    return
  }
}

</mosaic_0001>

<llo_original>
// kernel: tpu_custom_call.1
$region0: #{tpu_custom_call.1}
  #allocation0 [shape = 'u32[]', space=smem, size = 0x4, offset = 0x4, fixed_abs, tag = 'smem constant byte address 0x4 - core index']
  #allocation1 [shape = 'u32[144,128]{1,0:T(1,128)}', space=vmem, size = 0x12000, scoped, tag = 'internal scratch']
  %s0 = inlined_call_operand.hbm [shape: f32[8,32], index: 0, kind: input, shape index: {}]
  %s1 = inlined_call_operand.hbm [shape: f32[6,32], index: 1, kind: input, shape index: {}]
  %s2 = inlined_call_operand.hbm [shape: f32[32,1024], index: 2, kind: input, shape index: {}]
  %s3 = inlined_call_operand.vmem [shape: f32[1,1024], index: 3, kind: input, shape index: {}]
  %s4 = inlined_call_operand.hbm [shape: f32[32,32], index: 4, kind: input, shape index: {}]
  %s5 = inlined_call_operand.vmem [shape: f32[1,32], index: 5, kind: input, shape index: {}]
  %s6 = inlined_call_operand.hbm [shape: f32[1,1024], index: 6, kind: output, shape index: {0}]
  %s7 = inlined_call_operand.hbm [shape: f32[1,32], index: 7, kind: output, shape index: {1}]
  %s8 = inlined_call_operand.hbm [shape: f32[1,1024], index: 8, kind: output, shape index: {2}]
  %s9 = inlined_call_operand.hbm [shape: f32[1,32], index: 9, kind: output, shape index: {3}]
  %10 = xla_tuple %s6, %s7, %s8, %s9
  %s11 = sld [smem:[#allocation0]]
  $region74: #{tpu_custom_call.1} parent=0
    _
  %s13 = ssub.s32 1, %s11
  %s14 = scalar_select 0, %s13, %s11
  $region1: #{tpu_custom_call.1} parent=0
    #allocation2 [shape = 'u8[4096]{0}', space=vmem, size = 0x1000, scoped, tag = 'input window, operand 0, single buffered']
    #allocation3 [shape = 's32[1]{0}', space=sflag, size = 0x4, scoped, tag = 'scoped memory for tpu_custom_call.1']
    #allocation4 [shape = 's32[1]{0}', space=sflag, size = 0x4, scoped, tag = 'scoped memory for tpu_custom_call.1']
    #allocation5 [shape = 'u8[4096]{0}', space=vmem, size = 0x1000, scoped, tag = 'input window, operand 1, single buffered']
    #allocation6 [shape = 's32[1]{0}', space=sflag, size = 0x4, scoped, tag = 'scoped memory for tpu_custom_call.1']
    #allocation7 [shape = 'u8[131072]{0}', space=vmem, size = 0x20000, scoped, tag = 'input window, operand 2, single buffered']
    #allocation8 [shape = 'u8[16384]{0}', space=vmem, size = 0x4000, scoped, tag = 'input window, operand 4, single buffered']
    #allocation9 [shape = 's32[1]{0}', space=sflag, size = 0x4, scoped, tag = 'scoped memory for tpu_custom_call.1']
    #allocation10 [shape = 'u8[4096]{0}', space=vmem, size = 0x1000, scoped, tag = 'output window, operand 0, single buffered']
    #allocation11 [shape = 'u8[512]{0}', space=vmem, size = 0x400, scoped, tag = 'output window, operand 1, single buffered']
    #allocation12 [shape = 's32[1]{0}', space=sflag, size = 0x4, scoped, tag = 'scoped memory for tpu_custom_call.1']
    #allocation13 [shape = 'u8[4096]{0}', space=vmem, size = 0x1000, scoped, tag = 'output window, operand 2, single buffered']
    #allocation14 [shape = 'u8[512]{0}', space=vmem, size = 0x400, scoped, tag = 'output window, operand 3, single buffered']
    #allocation15 [shape = 's32[1]{0}', space=sflag, size = 0x4, scoped, tag = 'scoped memory for tpu_custom_call.1']
    %15 = vsyncpa [#allocation3], 0
    %16 = vsyncpa [#allocation6], 0
    %17 = vsyncpa [#allocation9], 0
    %18 = vsyncpa [#allocation4], 0
    %19 = vsyncpa [#allocation12], 0
    %20 = vsyncpa [#allocation15], 0
    // Predicated region
    $region2: #{tpu_custom_call.1} parent=1 // pred_check
      _
    $region3: #{tpu_custom_call.1} parent=1 // pred_check_branch
      %22 = sbr.rel (0) target = $region5
    $region4: #{tpu_custom_call.1} parent=1 // pred_region
      %s24 = ssub.s32 128, 128
      %25 = vsyncadd [#allocation3], %s24
      %s27 = sshll.u32 [#allocation2], 4
      %s28 = int_to_ptr.vmem [resolvable:$true] %s27
      %30 = dma.hbm_to_vmem [thread:$0]  %s0, 128, %s28, [#allocation3]
    $region5: #{tpu_custom_call.1} parent=1 // pred_fallthru
      _
    // Predicated region
    $region6: #{tpu_custom_call.1} parent=1 // pred_check
      _
    $region7: #{tpu_custom_call.1} parent=1 // pred_check_branch
      %32 = sbr.rel (0) target = $region9
    $region8: #{tpu_custom_call.1} parent=1 // pred_region
      %s34 = ssub.s32 128, 128
      %35 = vsyncadd [#allocation6], %s34
      %s37 = sshll.u32 [#allocation5], 4
      %s38 = int_to_ptr.vmem [resolvable:$true] %s37
      %40 = dma.hbm_to_vmem [thread:$0]  %s1, 128, %s38, [#allocation6]
    $region9: #{tpu_custom_call.1} parent=1 // pred_fallthru
      _
    // Predicated region
    $region10: #{tpu_custom_call.1} parent=1 // pred_check
      _
    $region11: #{tpu_custom_call.1} parent=1 // pred_check_branch
      %42 = sbr.rel (0) target = $region13
    $region12: #{tpu_custom_call.1} parent=1 // pred_region
      %s44 = ssub.s32 4096, 4096
      %45 = vsyncadd [#allocation6], %s44
      %s46 = sshll.u32 [#allocation7], 4
      %s47 = int_to_ptr.vmem [resolvable:$true] %s46
      %52 = dma.hbm_to_vmem [thread:$0]  %s2, 4096, %s47, [#allocation6], 1024, 1024, 64
    $region13: #{tpu_custom_call.1} parent=1 // pred_fallthru
      _
    // Predicated region
    $region14: #{tpu_custom_call.1} parent=1 // pred_check
      _
    $region15: #{tpu_custom_call.1} parent=1 // pred_check_branch
      %54 = sbr.rel (0) target = $region17
    $region16: #{tpu_custom_call.1} parent=1 // pred_region
      _
    $region17: #{tpu_custom_call.1} parent=1 // pred_fallthru
      _
    // Predicated region
    $region18: #{tpu_custom_call.1} parent=1 // pred_check
      _
    $region19: #{tpu_custom_call.1} parent=1 // pred_check_branch
      %56 = sbr.rel (0) target = $region21
    $region20: #{tpu_custom_call.1} parent=1 // pred_region
      %s58 = ssub.s32 512, 512
      %59 = vsyncadd [#allocation9], %s58
      %s60 = sshll.u32 [#allocation8], 4
      %s61 = int_to_ptr.vmem [resolvable:$true] %s60
      %66 = dma.hbm_to_vmem [thread:$0]  %s4, 512, %s61, [#allocation9], 128, 128, 8
    $region21: #{tpu_custom_call.1} parent=1 // pred_fallthru
      _
    // Predicated region
    $region22: #{tpu_custom_call.1} parent=1 // pred_check
      _
    $region23: #{tpu_custom_call.1} parent=1 // pred_check_branch
      %68 = sbr.rel (0) target = $region25
    $region24: #{tpu_custom_call.1} parent=1 // pred_region
      _
    $region25: #{tpu_custom_call.1} parent=1 // pred_fallthru
      _
    // Predicated region
    $region26: #{tpu_custom_call.1} parent=1 // pred_check
      _
    $region27: #{tpu_custom_call.1} parent=1 // pred_check_branch
      %70 = sbr.rel (0) target = $region29
    $region28: #{tpu_custom_call.1} parent=1 // pred_region
      %71 = dma.done [#allocation3], 128
    $region29: #{tpu_custom_call.1} parent=1 // pred_fallthru
      _
    // Predicated region
    $region30: #{tpu_custom_call.1} parent=1 // pred_check
      _
    $region31: #{tpu_custom_call.1} parent=1 // pred_check_branch
      %73 = sbr.rel (0) target = $region33
    $region32: #{tpu_custom_call.1} parent=1 // pred_region
      %74 = dma.done [#allocation6], 128
    $region33: #{tpu_custom_call.1} parent=1 // pred_fallthru
      _
    // Predicated region
    $region34: #{tpu_custom_call.1} parent=1 // pred_check
      _
    $region35: #{tpu_custom_call.1} parent=1 // pred_check_branch
      %76 = sbr.rel (0) target = $region37
    $region36: #{tpu_custom_call.1} parent=1 // pred_region
      %77 = dma.done [#allocation6], 4096
    $region37: #{tpu_custom_call.1} parent=1 // pred_fallthru
      _
    // Predicated region
    $region38: #{tpu_custom_call.1} parent=1 // pred_check
      _
    $region39: #{tpu_custom_call.1} parent=1 // pred_check_branch
      %79 = sbr.rel (0) target = $region41
    $region40: #{tpu_custom_call.1} parent=1 // pred_region
      %80 = dma.done [#allocation9], 512
    $region41: #{tpu_custom_call.1} parent=1 // pred_fallthru
      _
    %v81 = vld [vmem:[#allocation7] sm:$0xff]
    %v82 = vld [vmem:[#allocation7 + $0x8] sm:$0xff]
    %v83 = vld [vmem:[#allocation7 + $0x10] sm:$0xff]
    %v84 = vld [vmem:[#allocation7 + $0x18] sm:$0xff]
    %v85 = vld [vmem:[#allocation7 + $0x20] sm:$0xff]
    %v86 = vld [vmem:[#allocation7 + $0x28] sm:$0xff]
    %v87 = vld [vmem:[#allocation7 + $0x30] sm:$0xff]
    %v88 = vld [vmem:[#allocation7 + $0x38] sm:$0xff]
    %v89 = vld [vmem:[#allocation7 + $0x40] sm:$0xff]
    %v90 = vld [vmem:[#allocation7 + $0x48] sm:$0xff]
    %v91 = vld [vmem:[#allocation7 + $0x50] sm:$0xff]
    %v92 = vld [vmem:[#allocation7 + $0x58] sm:$0xff]
    %v93 = vld [vmem:[#allocation7 + $0x60] sm:$0xff]
    %v94 = vld [vmem:[#allocation7 + $0x68] sm:$0xff]
    %v95 = vld [vmem:[#allocation7 + $0x70] sm:$0xff]
    %v96 = vld [vmem:[#allocation7 + $0x78] sm:$0xff]
    %v97 = vld [vmem:[#allocation7 + $0x80] sm:$0xff]
    %v98 = vld [vmem:[#allocation7 + $0x88] sm:$0xff]
    %v99 = vld [vmem:[#allocation7 + $0x90] sm:$0xff]
    %v100 = vld [vmem:[#allocation7 + $0x98] sm:$0xff]
    %v101 = vld [vmem:[#allocation7 + $0xa0] sm:$0xff]
    %v102 = vld [vmem:[#allocation7 + $0xa8] sm:$0xff]
    %v103 = vld [vmem:[#allocation7 + $0xb0] sm:$0xff]
    %v104 = vld [vmem:[#allocation7 + $0xb8] sm:$0xff]
    %v105 = vld [vmem:[#allocation7 + $0xc0] sm:$0xff]
    %v106 = vld [vmem:[#allocation7 + $0xc8] sm:$0xff]
    %v107 = vld [vmem:[#allocation7 + $0xd0] sm:$0xff]
    %v108 = vld [vmem:[#allocation7 + $0xd8] sm:$0xff]
    %v109 = vld [vmem:[#allocation7 + $0xe0] sm:$0xff]
    %v110 = vld [vmem:[#allocation7 + $0xe8] sm:$0xff]
    %v111 = vld [vmem:[#allocation7 + $0xf0] sm:$0xff]
    %v112 = vld [vmem:[#allocation7 + $0xf8] sm:$0xff]
    %v113 = vld [vmem:[%s3] sm:$0xff]
    %v114 = vld [vmem:[#allocation8] sm:$0xff]
    %v115 = vld [vmem:[#allocation8 + $0x8] sm:$0xff]
    %v116 = vld [vmem:[#allocation8 + $0x10] sm:$0xff]
    %v117 = vld [vmem:[#allocation8 + $0x18] sm:$0xff]
    %v118 = vld [vmem:[%s5] sm:$0x1]
    %v119 = vld [vmem:[#allocation2] sm:$0xff]
    %vm120 = vcmask 261120
    %v121 = vsel %vm120, %v119, 0.0
    %v122 = vrot.slane %v121, 4
    %v123 = vadd.f32 %v121, %v122
    %v124 = vrot.slane %v123, 2
    %v125 = vadd.f32 %v123, %v124
    %v126 = vrot.slane %v125, 1
    %v127 = vadd.f32 %v125, %v126
    %v128 = vrcp.pop 8.0
    %v129 = vmul.f32 %v127, %v128
    %v130 = vld [vmem:[#allocation5] sm:$0x3f]
    %vm131 = vcmask 259072
    %v132 = vsel %vm131, %v130, 0.0
    %v133 = vrot.slane %v132, 4
    %v134 = vadd.f32 %v132, %v133
    %v135 = vrot.slane %v134, 2
    %v136 = vadd.f32 %v134, %v135
    %v137 = vrot.slane %v136, 1
    %v138 = vadd.f32 %v136, %v137
    %v139 = vrcp.pop 6.0
    %v140 = vmul.f32 %v138, %v139
    %v142 = vlaneseq
    %v143 = vshrl.u32 %v142, 7
    %v144 = vsub.s32 0, %v143
    %v145 = vrot.slane %v113, %v144
    %v146 = vlaneseq
    %v147 = vshrl.u32 %v146, 7
    %v148 = vsub.s32 1, %v147
    %v149 = vrot.slane %v113, %v148
    %v150 = vlaneseq
    %v151 = vshrl.u32 %v150, 7
    %v152 = vsub.s32 2, %v151
    %v153 = vrot.slane %v113, %v152
    %v154 = vlaneseq
    %v155 = vshrl.u32 %v154, 7
    %v156 = vsub.s32 3, %v155
    %v157 = vrot.slane %v113, %v156
    %v158 = vlaneseq
    %v159 = vshrl.u32 %v158, 7
    %v160 = vsub.s32 4, %v159
    %v161 = vrot.slane %v113, %v160
    %v162 = vlaneseq
    %v163 = vshrl.u32 %v162, 7
    %v164 = vsub.s32 5, %v163
    %v165 = vrot.slane %v113, %v164
    %v166 = vlaneseq
    %v167 = vshrl.u32 %v166, 7
    %v168 = vsub.s32 6, %v167
    %v169 = vrot.slane %v113, %v168
    %v170 = vlaneseq
    %v171 = vshrl.u32 %v170, 7
    %v172 = vsub.s32 7, %v171
    %v173 = vrot.slane %v113, %v172
    %v183 = vsel %vm120, %v129, 0
    %185 = vmatprep.subr.mxu0 %v82
    %186 = vmatpush1.msra.mxu0 %v81
    %187 = vmatprep.subr.mxu0 %v90
    %188 = vmatpush1.msra.mxu0 %v89
    %189 = vmatprep.subr.mxu0 %v98
    %190 = vmatpush1.msra.mxu0 %v97
    %191 = vmatprep.subr.mxu0 %v106
    %192 = vmatpush1.msra.mxu0 %v105
    %193 = vmatprep.subr.mxu0 0.0
    %194 = vmatpush1.msra.mxu0 0.0
    %195 = vmatprep.subr.mxu0 0.0
    %196 = vmatpush1.msra.mxu0 0.0
    %197 = vmatprep.subr.mxu0 0.0
    %198 = vmatpush1.msra.mxu0 0.0
    %199 = vmatprep.subr.mxu0 0.0
    %200 = vmatpush1.msra.mxu0 0.0
    %201 = vmatprep.subr.mxu0 0.0
    %202 = vmatpush1.msra.mxu0 0.0
    %203 = vmatprep.subr.mxu0 0.0
    %204 = vmatpush1.msra.mxu0 0.0
    %205 = vmatprep.subr.mxu0 0.0
    %206 = vmatpush1.msra.mxu0 0.0
    %207 = vmatprep.subr.mxu0 0.0
    %208 = vmatpush1.msra.mxu0 0.0
    %209 = vmatprep.subr.mxu0 0.0
    %210 = vmatpush1.msra.mxu0 0.0
    %211 = vmatprep.subr.mxu0 0.0
    %212 = vmatpush1.msra.mxu0 0.0
    %213 = vmatprep.subr.mxu0 0.0
    %214 = vmatpush1.msra.mxu0 0.0
    %215 = vmatprep.subr.mxu0 0.0
    %216 = vmatpush1.msra.mxu0 0.0
    %217 = vmatprep.subr.mxu0 0.0
    %218 = vmatpush1.msra.mxu0 0.0
    %219 = vmatprep.subr.mxu0 0.0
    %220 = vmatpush1.msra.mxu0 0.0
    %221 = vmatprep.subr.mxu0 0.0
    %222 = vmatpush1.msra.mxu0 0.0
    %223 = vmatprep.subr.mxu0 0.0
    %224 = vmatpush1.msra.mxu0 0.0
    %225 = vmatprep.subr.mxu0 0.0
    %226 = vmatpush1.msra.mxu0 0.0
    %227 = vmatprep.subr.mxu0 0.0
    %228 = vmatpush1.msra.mxu0 0.0
    %229 = vmatprep.subr.mxu0 0.0
    %230 = vmatpush1.msra.mxu0 0.0
    %231 = vmatprep.subr.mxu0 0.0
    %232 = vmatpush1.msra.mxu0 0.0
    %233 = vmatprep.subr.mxu0 0.0
    %234 = vmatpush1.msra.mxu0 0.0
    %235 = vmatprep.subr.mxu0 0.0
    %236 = vmatpush1.msra.mxu0 0.0
    %237 = vmatprep.subr.mxu0 0.0
    %238 = vmatpush1.msra.mxu0 0.0
    %239 = vmatprep.subr.mxu0 0.0
    %240 = vmatpush1.msra.mxu0 0.0
    %241 = vmatprep.subr.mxu0 0.0
    %242 = vmatpush1.msra.mxu0 0.0
    %243 = vmatprep.subr.mxu0 0.0
    %244 = vmatpush1.msra.mxu0 0.0
    %245 = vmatprep.subr.mxu0 0.0
    %246 = vmatpush1.msra.mxu0 0.0
    %247 = vmatprep.subr.mxu0 0.0
    %248 = vmatpush1.msra.mxu0 0.0
    %249 = vmatprep.mubr.f32.mxu0 0.0
    %250 = vmatmul.mubr.f32.gmra.mrb[0].mxu0 %v183
    %v251 = vpop.f32.mrb[0].mxu0
    %v252 = vadd.f32 %v145, %v251
    %v253 = vpop.f32.mrb[0].mxu0
    %v254 = vadd.f32 %v149, %v253
    %255 = vdwg.mxu0
    %256 = vmatprep.subr.mxu0 %v84
    %257 = vmatpush1.msra.mxu0 %v83
    %258 = vmatprep.subr.mxu0 %v92
    %259 = vmatpush1.msra.mxu0 %v91
    %260 = vmatprep.subr.mxu0 %v100
    %261 = vmatpush1.msra.mxu0 %v99
    %262 = vmatprep.subr.mxu0 %v108
    %263 = vmatpush1.msra.mxu0 %v107
    %264 = vmatprep.subr.mxu0 0.0
    %265 = vmatpush1.msra.mxu0 0.0
    %266 = vmatprep.subr.mxu0 0.0
    %267 = vmatpush1.msra.mxu0 0.0
    %268 = vmatprep.subr.mxu0 0.0
    %269 = vmatpush1.msra.mxu0 0.0
    %270 = vmatprep.subr.mxu0 0.0
    %271 = vmatpush1.msra.mxu0 0.0
    %272 = vmatprep.subr.mxu0 0.0
    %273 = vmatpush1.msra.mxu0 0.0
    %274 = vmatprep.subr.mxu0 0.0
    %275 = vmatpush1.msra.mxu0 0.0
    %276 = vmatprep.subr.mxu0 0.0
    %277 = vmatpush1.msra.mxu0 0.0
    %278 = vmatprep.subr.mxu0 0.0
    %279 = vmatpush1.msra.mxu0 0.0
    %280 = vmatprep.subr.mxu0 0.0
    %281 = vmatpush1.msra.mxu0 0.0
    %282 = vmatprep.subr.mxu0 0.0
    %283 = vmatpush1.msra.mxu0 0.0
    %284 = vmatprep.subr.mxu0 0.0
    %285 = vmatpush1.msra.mxu0 0.0
    %286 = vmatprep.subr.mxu0 0.0
    %287 = vmatpush1.msra.mxu0 0.0
    %288 = vmatprep.subr.mxu0 0.0
    %289 = vmatpush1.msra.mxu0 0.0
    %290 = vmatprep.subr.mxu0 0.0
    %291 = vmatpush1.msra.mxu0 0.0
    %292 = vmatprep.subr.mxu0 0.0
    %293 = vmatpush1.msra.mxu0 0.0
    %294 = vmatprep.subr.mxu0 0.0
    %295 = vmatpush1.msra.mxu0 0.0
    %296 = vmatprep.subr.mxu0 0.0
    %297 = vmatpush1.msra.mxu0 0.0
    %298 = vmatprep.subr.mxu0 0.0
    %299 = vmatpush1.msra.mxu0 0.0
    %300 = vmatprep.subr.mxu0 0.0
    %301 = vmatpush1.msra.mxu0 0.0
    %302 = vmatprep.subr.mxu0 0.0
    %303 = vmatpush1.msra.mxu0 0.0
    %304 = vmatprep.subr.mxu0 0.0
    %305 = vmatpush1.msra.mxu0 0.0
    %306 = vmatprep.subr.mxu0 0.0
    %307 = vmatpush1.msra.mxu0 0.0
    %308 = vmatprep.subr.mxu0 0.0
    %309 = vmatpush1.msra.mxu0 0.0
    %310 = vmatprep.subr.mxu0 0.0
    %311 = vmatpush1.msra.mxu0 0.0
    %312 = vmatprep.subr.mxu0 0.0
    %313 = vmatpush1.msra.mxu0 0.0
    %314 = vmatprep.subr.mxu0 0.0
    %315 = vmatpush1.msra.mxu0 0.0
    %316 = vmatprep.subr.mxu0 0.0
    %317 = vmatpush1.msra.mxu0 0.0
    %318 = vmatprep.subr.mxu0 0.0
    %319 = vmatpush1.msra.mxu0 0.0
    %320 = vmatprep.mubr.f32.mxu0 0.0
    %321 = vmatmul.mubr.f32.gmra.mrb[0].mxu0 %v183
    %v322 = vpop.f32.mrb[0].mxu0
    %v323 = vadd.f32 %v153, %v322
    %v324 = vpop.f32.mrb[0].mxu0
    %v325 = vadd.f32 %v157, %v324
    %326 = vdwg.mxu0
    %327 = vmatprep.subr.mxu0 %v86
    %328 = vmatpush1.msra.mxu0 %v85
    %329 = vmatprep.subr.mxu0 %v94
    %330 = vmatpush1.msra.mxu0 %v93
    %331 = vmatprep.subr.mxu0 %v102
    %332 = vmatpush1.msra.mxu0 %v101
    %333 = vmatprep.subr.mxu0 %v110
    %334 = vmatpush1.msra.mxu0 %v109
    %335 = vmatprep.subr.mxu0 0.0
    %336 = vmatpush1.msra.mxu0 0.0
    %337 = vmatprep.subr.mxu0 0.0
    %338 = vmatpush1.msra.mxu0 0.0
    %339 = vmatprep.subr.mxu0 0.0
    %340 = vmatpush1.msra.mxu0 0.0
    %341 = vmatprep.subr.mxu0 0.0
    %342 = vmatpush1.msra.mxu0 0.0
    %343 = vmatprep.subr.mxu0 0.0
    %344 = vmatpush1.msra.mxu0 0.0
    %345 = vmatprep.subr.mxu0 0.0
    %346 = vmatpush1.msra.mxu0 0.0
    %347 = vmatprep.subr.mxu0 0.0
    %348 = vmatpush1.msra.mxu0 0.0
    %349 = vmatprep.subr.mxu0 0.0
    %350 = vmatpush1.msra.mxu0 0.0
    %351 = vmatprep.subr.mxu0 0.0
    %352 = vmatpush1.msra.mxu0 0.0
    %353 = vmatprep.subr.mxu0 0.0
    %354 = vmatpush1.msra.mxu0 0.0
    %355 = vmatprep.subr.mxu0 0.0
    %356 = vmatpush1.msra.mxu0 0.0
    %357 = vmatprep.subr.mxu0 0.0
    %358 = vmatpush1.msra.mxu0 0.0
    %359 = vmatprep.subr.mxu0 0.0
    %360 = vmatpush1.msra.mxu0 0.0
    %361 = vmatprep.subr.mxu0 0.0
    %362 = vmatpush1.msra.mxu0 0.0
    %363 = vmatprep.subr.mxu0 0.0
    %364 = vmatpush1.msra.mxu0 0.0
    %365 = vmatprep.subr.mxu0 0.0
    %366 = vmatpush1.msra.mxu0 0.0
    %367 = vmatprep.subr.mxu0 0.0
    %368 = vmatpush1.msra.mxu0 0.0
    %369 = vmatprep.subr.mxu0 0.0
    %370 = vmatpush1.msra.mxu0 0.0
    %371 = vmatprep.subr.mxu0 0.0
    %372 = vmatpush1.msra.mxu0 0.0
    %373 = vmatprep.subr.mxu0 0.0
    %374 = vmatpush1.msra.mxu0 0.0
    %375 = vmatprep.subr.mxu0 0.0
    %376 = vmatpush1.msra.mxu0 0.0
    %377 = vmatprep.subr.mxu0 0.0
    %378 = vmatpush1.msra.mxu0 0.0
    %379 = vmatprep.subr.mxu0 0.0
    %380 = vmatpush1.msra.mxu0 0.0
    %381 = vmatprep.subr.mxu0 0.0
    %382 = vmatpush1.msra.mxu0 0.0
    %383 = vmatprep.subr.mxu0 0.0
    %384 = vmatpush1.msra.mxu0 0.0
    %385 = vmatprep.subr.mxu0 0.0
    %386 = vmatpush1.msra.mxu0 0.0
    %387 = vmatprep.subr.mxu0 0.0
    %388 = vmatpush1.msra.mxu0 0.0
    %389 = vmatprep.subr.mxu0 0.0
    %390 = vmatpush1.msra.mxu0 0.0
    %391 = vmatprep.mubr.f32.mxu0 0.0
    %392 = vmatmul.mubr.f32.gmra.mrb[0].mxu0 %v183
    %v393 = vpop.f32.mrb[0].mxu0
    %v394 = vadd.f32 %v161, %v393
    %v395 = vpop.f32.mrb[0].mxu0
    %v396 = vadd.f32 %v165, %v395
    %397 = vdwg.mxu0
    %398 = vmatprep.subr.mxu0 %v88
    %399 = vmatpush1.msra.mxu0 %v87
    %400 = vmatprep.subr.mxu0 %v96
    %401 = vmatpush1.msra.mxu0 %v95
    %402 = vmatprep.subr.mxu0 %v104
    %403 = vmatpush1.msra.mxu0 %v103
    %404 = vmatprep.subr.mxu0 %v112
    %405 = vmatpush1.msra.mxu0 %v111
    %406 = vmatprep.subr.mxu0 0.0
    %407 = vmatpush1.msra.mxu0 0.0
    %408 = vmatprep.subr.mxu0 0.0
    %409 = vmatpush1.msra.mxu0 0.0
    %410 = vmatprep.subr.mxu0 0.0
    %411 = vmatpush1.msra.mxu0 0.0
    %412 = vmatprep.subr.mxu0 0.0
    %413 = vmatpush1.msra.mxu0 0.0
    %414 = vmatprep.subr.mxu0 0.0
    %415 = vmatpush1.msra.mxu0 0.0
    %416 = vmatprep.subr.mxu0 0.0
    %417 = vmatpush1.msra.mxu0 0.0
    %418 = vmatprep.subr.mxu0 0.0
    %419 = vmatpush1.msra.mxu0 0.0
    %420 = vmatprep.subr.mxu0 0.0
    %421 = vmatpush1.msra.mxu0 0.0
    %422 = vmatprep.subr.mxu0 0.0
    %423 = vmatpush1.msra.mxu0 0.0
    %424 = vmatprep.subr.mxu0 0.0
    %425 = vmatpush1.msra.mxu0 0.0
    %426 = vmatprep.subr.mxu0 0.0
    %427 = vmatpush1.msra.mxu0 0.0
    %428 = vmatprep.subr.mxu0 0.0
    %429 = vmatpush1.msra.mxu0 0.0
    %430 = vmatprep.subr.mxu0 0.0
    %431 = vmatpush1.msra.mxu0 0.0
    %432 = vmatprep.subr.mxu0 0.0
    %433 = vmatpush1.msra.mxu0 0.0
    %434 = vmatprep.subr.mxu0 0.0
    %435 = vmatpush1.msra.mxu0 0.0
    %436 = vmatprep.subr.mxu0 0.0
    %437 = vmatpush1.msra.mxu0 0.0
    %438 = vmatprep.subr.mxu0 0.0
    %439 = vmatpush1.msra.mxu0 0.0
    %440 = vmatprep.subr.mxu0 0.0
    %441 = vmatpush1.msra.mxu0 0.0
    %442 = vmatprep.subr.mxu0 0.0
    %443 = vmatpush1.msra.mxu0 0.0
    %444 = vmatprep.subr.mxu0 0.0
    %445 = vmatpush1.msra.mxu0 0.0
    %446 = vmatprep.subr.mxu0 0.0
    %447 = vmatpush1.msra.mxu0 0.0
    %448 = vmatprep.subr.mxu0 0.0
    %449 = vmatpush1.msra.mxu0 0.0
    %450 = vmatprep.subr.mxu0 0.0
    %451 = vmatpush1.msra.mxu0 0.0
    %452 = vmatprep.subr.mxu0 0.0
    %453 = vmatpush1.msra.mxu0 0.0
    %454 = vmatprep.subr.mxu0 0.0
    %455 = vmatpush1.msra.mxu0 0.0
    %456 = vmatprep.subr.mxu0 0.0
    %457 = vmatpush1.msra.mxu0 0.0
    %458 = vmatprep.subr.mxu0 0.0
    %459 = vmatpush1.msra.mxu0 0.0
    %460 = vmatprep.subr.mxu0 0.0
    %461 = vmatpush1.msra.mxu0 0.0
    %462 = vmatprep.mubr.f32.mxu0 0.0
    %463 = vmatmul.mubr.f32.gmra.mrb[0].mxu0 %v183
    %v464 = vpop.f32.mrb[0].mxu0
    %v465 = vadd.f32 %v169, %v464
    %v466 = vpop.f32.mrb[0].mxu0
    %v467 = vadd.f32 %v173, %v466
    %468 = vdwg.mxu0
    %v477 = vcombine.low %v252, %v254
    %v478 = vcombine.low %v323, %v325
    %v479 = vcombine.low %v394, %v396
    %v480 = vcombine.low %v465, %v467
    %v482 = vunpack.c.l.s4 1966171168
    %v483 = vunpack.c.0.s8 %v482
    %v484 = vlaneseq
    %v485 = vshrl.u32 %v484, 7
    %v486 = vsub.s32 %v483, %v485
    %v487 = vrot.slane %v477, %v486
    %v489 = vunpack.c.l.s4 1966171168
    %v490 = vunpack.c.0.s8 %v489
    %v491 = vlaneseq
    %v492 = vshrl.u32 %v491, 7
    %v493 = vsub.s32 %v490, %v492
    %v494 = vrot.slane %v478, %v493
    %v496 = vunpack.c.l.s4 1966171168
    %v497 = vunpack.c.0.s8 %v496
    %v498 = vlaneseq
    %v499 = vshrl.u32 %v498, 7
    %v500 = vsub.s32 %v497, %v499
    %v501 = vrot.slane %v479, %v500
    %v503 = vunpack.c.l.s4 1966171168
    %v504 = vunpack.c.0.s8 %v503
    %v505 = vlaneseq
    %v506 = vshrl.u32 %v505, 7
    %v507 = vsub.s32 %v504, %v506
    %v508 = vrot.slane %v480, %v507
    %v509 = vcombine.low %v487, %v494
    %v510 = vcombine.low %v501, %v508
    %v512 = vunpack.c.l.s4 1966171168
    %v513 = vunpack.c.0.s8 %v512
    %v514 = vlaneseq
    %v515 = vshrl.u32 %v514, 7
    %v516 = vsub.s32 %v513, %v515
    %v517 = vrot.slane %v509, %v516
    %v519 = vunpack.c.l.s4 1966171168
    %v520 = vunpack.c.0.s8 %v519
    %v521 = vlaneseq
    %v522 = vshrl.u32 %v521, 7
    %v523 = vsub.s32 %v520, %v522
    %v524 = vrot.slane %v510, %v523
    %v525 = vcombine.low %v517, %v524
    %527 = vst [vmem:[#allocation10] sm:$0xff] %v525
    %528 = vmatprep.subr.mxu0 0.0
    %529 = vmatpush1.msra.mxu0 %v114
    %530 = vmatprep.subr.mxu0 0.0
    %531 = vmatpush1.msra.mxu0 %v115
    %532 = vmatprep.subr.mxu0 0.0
    %533 = vmatpush1.msra.mxu0 %v116
    %534 = vmatprep.subr.mxu0 0.0
    %535 = vmatpush1.msra.mxu0 %v117
    %536 = vmatprep.subr.mxu0 0.0
    %537 = vmatpush1.msra.mxu0 0.0
    %538 = vmatprep.subr.mxu0 0.0
    %539 = vmatpush1.msra.mxu0 0.0
    %540 = vmatprep.subr.mxu0 0.0
    %541 = vmatpush1.msra.mxu0 0.0
    %542 = vmatprep.subr.mxu0 0.0
    %543 = vmatpush1.msra.mxu0 0.0
    %544 = vmatprep.subr.mxu0 0.0
    %545 = vmatpush1.msra.mxu0 0.0
    %546 = vmatprep.subr.mxu0 0.0
    %547 = vmatpush1.msra.mxu0 0.0
    %548 = vmatprep.subr.mxu0 0.0
    %549 = vmatpush1.msra.mxu0 0.0
    %550 = vmatprep.subr.mxu0 0.0
    %551 = vmatpush1.msra.mxu0 0.0
    %552 = vmatprep.subr.mxu0 0.0
    %553 = vmatpush1.msra.mxu0 0.0
    %554 = vmatprep.subr.mxu0 0.0
    %555 = vmatpush1.msra.mxu0 0.0
    %556 = vmatprep.subr.mxu0 0.0
    %557 = vmatpush1.msra.mxu0 0.0
    %558 = vmatprep.subr.mxu0 0.0
    %559 = vmatpush1.msra.mxu0 0.0
    %560 = vmatprep.subr.mxu0 0.0
    %561 = vmatpush1.msra.mxu0 0.0
    %562 = vmatprep.subr.mxu0 0.0
    %563 = vmatpush1.msra.mxu0 0.0
    %564 = vmatprep.subr.mxu0 0.0
    %565 = vmatpush1.msra.mxu0 0.0
    %566 = vmatprep.subr.mxu0 0.0
    %567 = vmatpush1.msra.mxu0 0.0
    %568 = vmatprep.subr.mxu0 0.0
    %569 = vmatpush1.msra.mxu0 0.0
    %570 = vmatprep.subr.mxu0 0.0
    %571 = vmatpush1.msra.mxu0 0.0
    %572 = vmatprep.subr.mxu0 0.0
    %573 = vmatpush1.msra.mxu0 0.0
    %574 = vmatprep.subr.mxu0 0.0
    %575 = vmatpush1.msra.mxu0 0.0
    %576 = vmatprep.subr.mxu0 0.0
    %577 = vmatpush1.msra.mxu0 0.0
    %578 = vmatprep.subr.mxu0 0.0
    %579 = vmatpush1.msra.mxu0 0.0
    %580 = vmatprep.subr.mxu0 0.0
    %581 = vmatpush1.msra.mxu0 0.0
    %582 = vmatprep.subr.mxu0 0.0
    %583 = vmatpush1.msra.mxu0 0.0
    %584 = vmatprep.subr.mxu0 0.0
    %585 = vmatpush1.msra.mxu0 0.0
    %586 = vmatprep.subr.mxu0 0.0
    %587 = vmatpush1.msra.mxu0 0.0
    %588 = vmatprep.subr.mxu0 0.0
    %589 = vmatpush1.msra.mxu0 0.0
    %590 = vmatprep.subr.mxu0 0.0
    %591 = vmatpush1.msra.mxu0 0.0
    %592 = vmatprep.mubr.f32.mxu0 0.0
    %593 = vmatmul.mubr.f32.gmra.mrb[0].mxu0 %v183
    %v594 = vpop.f32.mrb[0].mxu0
    %v595 = vadd.f32 %v118, %v594
    %v596 = vpop.f32.mrb[0].mxu0
    %597 = vdwg.mxu0
    %vm598 = vcmask 253952
    %599 = vst.msk [vmem:[#allocation11] sm:$0x1] %vm598, %v595
    %v601 = vsel %vm120, %v140, 0
    %603 = vmatprep.subr.mxu0 %v82
    %604 = vmatpush1.msra.mxu0 %v81
    %605 = vmatprep.subr.mxu0 %v90
    %606 = vmatpush1.msra.mxu0 %v89
    %607 = vmatprep.subr.mxu0 %v98
    %608 = vmatpush1.msra.mxu0 %v97
    %609 = vmatprep.subr.mxu0 %v106
    %610 = vmatpush1.msra.mxu0 %v105
    %611 = vmatprep.subr.mxu0 0.0
    %612 = vmatpush1.msra.mxu0 0.0
    %613 = vmatprep.subr.mxu0 0.0
    %614 = vmatpush1.msra.mxu0 0.0
    %615 = vmatprep.subr.mxu0 0.0
    %616 = vmatpush1.msra.mxu0 0.0
    %617 = vmatprep.subr.mxu0 0.0
    %618 = vmatpush1.msra.mxu0 0.0
    %619 = vmatprep.subr.mxu0 0.0
    %620 = vmatpush1.msra.mxu0 0.0
    %621 = vmatprep.subr.mxu0 0.0
    %622 = vmatpush1.msra.mxu0 0.0
    %623 = vmatprep.subr.mxu0 0.0
    %624 = vmatpush1.msra.mxu0 0.0
    %625 = vmatprep.subr.mxu0 0.0
    %626 = vmatpush1.msra.mxu0 0.0
    %627 = vmatprep.subr.mxu0 0.0
    %628 = vmatpush1.msra.mxu0 0.0
    %629 = vmatprep.subr.mxu0 0.0
    %630 = vmatpush1.msra.mxu0 0.0
    %631 = vmatprep.subr.mxu0 0.0
    %632 = vmatpush1.msra.mxu0 0.0
    %633 = vmatprep.subr.mxu0 0.0
    %634 = vmatpush1.msra.mxu0 0.0
    %635 = vmatprep.subr.mxu0 0.0
    %636 = vmatpush1.msra.mxu0 0.0
    %637 = vmatprep.subr.mxu0 0.0
    %638 = vmatpush1.msra.mxu0 0.0
    %639 = vmatprep.subr.mxu0 0.0
    %640 = vmatpush1.msra.mxu0 0.0
    %641 = vmatprep.subr.mxu0 0.0
    %642 = vmatpush1.msra.mxu0 0.0
    %643 = vmatprep.subr.mxu0 0.0
    %644 = vmatpush1.msra.mxu0 0.0
    %645 = vmatprep.subr.mxu0 0.0
    %646 = vmatpush1.msra.mxu0 0.0
    %647 = vmatprep.subr.mxu0 0.0
    %648 = vmatpush1.msra.mxu0 0.0
    %649 = vmatprep.subr.mxu0 0.0
    %650 = vmatpush1.msra.mxu0 0.0
    %651 = vmatprep.subr.mxu0 0.0
    %652 = vmatpush1.msra.mxu0 0.0
    %653 = vmatprep.subr.mxu0 0.0
    %654 = vmatpush1.msra.mxu0 0.0
    %655 = vmatprep.subr.mxu0 0.0
    %656 = vmatpush1.msra.mxu0 0.0
    %657 = vmatprep.subr.mxu0 0.0
    %658 = vmatpush1.msra.mxu0 0.0
    %659 = vmatprep.subr.mxu0 0.0
    %660 = vmatpush1.msra.mxu0 0.0
    %661 = vmatprep.subr.mxu0 0.0
    %662 = vmatpush1.msra.mxu0 0.0
    %663 = vmatprep.subr.mxu0 0.0
    %664 = vmatpush1.msra.mxu0 0.0
    %665 = vmatprep.subr.mxu0 0.0
    %666 = vmatpush1.msra.mxu0 0.0
    %667 = vmatprep.mubr.f32.mxu0 0.0
    %668 = vmatmul.mubr.f32.gmra.mrb[0].mxu0 %v601
    %v669 = vpop.f32.mrb[0].mxu0
    %v670 = vadd.f32 %v145, %v669
    %v671 = vpop.f32.mrb[0].mxu0
    %v672 = vadd.f32 %v149, %v671
    %673 = vdwg.mxu0
    %674 = vmatprep.subr.mxu0 %v84
    %675 = vmatpush1.msra.mxu0 %v83
    %676 = vmatprep.subr.mxu0 %v92
    %677 = vmatpush1.msra.mxu0 %v91
    %678 = vmatprep.subr.mxu0 %v100
    %679 = vmatpush1.msra.mxu0 %v99
    %680 = vmatprep.subr.mxu0 %v108
    %681 = vmatpush1.msra.mxu0 %v107
    %682 = vmatprep.subr.mxu0 0.0
    %683 = vmatpush1.msra.mxu0 0.0
    %684 = vmatprep.subr.mxu0 0.0
    %685 = vmatpush1.msra.mxu0 0.0
    %686 = vmatprep.subr.mxu0 0.0
    %687 = vmatpush1.msra.mxu0 0.0
    %688 = vmatprep.subr.mxu0 0.0
    %689 = vmatpush1.msra.mxu0 0.0
    %690 = vmatprep.subr.mxu0 0.0
    %691 = vmatpush1.msra.mxu0 0.0
    %692 = vmatprep.subr.mxu0 0.0
    %693 = vmatpush1.msra.mxu0 0.0
    %694 = vmatprep.subr.mxu0 0.0
    %695 = vmatpush1.msra.mxu0 0.0
    %696 = vmatprep.subr.mxu0 0.0
    %697 = vmatpush1.msra.mxu0 0.0
    %698 = vmatprep.subr.mxu0 0.0
    %699 = vmatpush1.msra.mxu0 0.0
    %700 = vmatprep.subr.mxu0 0.0
    %701 = vmatpush1.msra.mxu0 0.0
    %702 = vmatprep.subr.mxu0 0.0
    %703 = vmatpush1.msra.mxu0 0.0
    %704 = vmatprep.subr.mxu0 0.0
    %705 = vmatpush1.msra.mxu0 0.0
    %706 = vmatprep.subr.mxu0 0.0
    %707 = vmatpush1.msra.mxu0 0.0
    %708 = vmatprep.subr.mxu0 0.0
    %709 = vmatpush1.msra.mxu0 0.0
    %710 = vmatprep.subr.mxu0 0.0
    %711 = vmatpush1.msra.mxu0 0.0
    %712 = vmatprep.subr.mxu0 0.0
    %713 = vmatpush1.msra.mxu0 0.0
    %714 = vmatprep.subr.mxu0 0.0
    %715 = vmatpush1.msra.mxu0 0.0
    %716 = vmatprep.subr.mxu0 0.0
    %717 = vmatpush1.msra.mxu0 0.0
    %718 = vmatprep.subr.mxu0 0.0
    %719 = vmatpush1.msra.mxu0 0.0
    %720 = vmatprep.subr.mxu0 0.0
    %721 = vmatpush1.msra.mxu0 0.0
    %722 = vmatprep.subr.mxu0 0.0
    %723 = vmatpush1.msra.mxu0 0.0
    %724 = vmatprep.subr.mxu0 0.0
    %725 = vmatpush1.msra.mxu0 0.0
    %726 = vmatprep.subr.mxu0 0.0
    %727 = vmatpush1.msra.mxu0 0.0
    %728 = vmatprep.subr.mxu0 0.0
    %729 = vmatpush1.msra.mxu0 0.0
    %730 = vmatprep.subr.mxu0 0.0
    %731 = vmatpush1.msra.mxu0 0.0
    %732 = vmatprep.subr.mxu0 0.0
    %733 = vmatpush1.msra.mxu0 0.0
    %734 = vmatprep.subr.mxu0 0.0
    %735 = vmatpush1.msra.mxu0 0.0
    %736 = vmatprep.subr.mxu0 0.0
    %737 = vmatpush1.msra.mxu0 0.0
    %738 = vmatprep.mubr.f32.mxu0 0.0
    %739 = vmatmul.mubr.f32.gmra.mrb[0].mxu0 %v601
    %v740 = vpop.f32.mrb[0].mxu0
    %v741 = vadd.f32 %v153, %v740
    %v742 = vpop.f32.mrb[0].mxu0
    %v743 = vadd.f32 %v157, %v742
    %744 = vdwg.mxu0
    %745 = vmatprep.subr.mxu0 %v86
    %746 = vmatpush1.msra.mxu0 %v85
    %747 = vmatprep.subr.mxu0 %v94
    %748 = vmatpush1.msra.mxu0 %v93
    %749 = vmatprep.subr.mxu0 %v102
    %750 = vmatpush1.msra.mxu0 %v101
    %751 = vmatprep.subr.mxu0 %v110
    %752 = vmatpush1.msra.mxu0 %v109
    %753 = vmatprep.subr.mxu0 0.0
    %754 = vmatpush1.msra.mxu0 0.0
    %755 = vmatprep.subr.mxu0 0.0
    %756 = vmatpush1.msra.mxu0 0.0
    %757 = vmatprep.subr.mxu0 0.0
    %758 = vmatpush1.msra.mxu0 0.0
    %759 = vmatprep.subr.mxu0 0.0
    %760 = vmatpush1.msra.mxu0 0.0
    %761 = vmatprep.subr.mxu0 0.0
    %762 = vmatpush1.msra.mxu0 0.0
    %763 = vmatprep.subr.mxu0 0.0
    %764 = vmatpush1.msra.mxu0 0.0
    %765 = vmatprep.subr.mxu0 0.0
    %766 = vmatpush1.msra.mxu0 0.0
    %767 = vmatprep.subr.mxu0 0.0
    %768 = vmatpush1.msra.mxu0 0.0
    %769 = vmatprep.subr.mxu0 0.0
    %770 = vmatpush1.msra.mxu0 0.0
    %771 = vmatprep.subr.mxu0 0.0
    %772 = vmatpush1.msra.mxu0 0.0
    %773 = vmatprep.subr.mxu0 0.0
    %774 = vmatpush1.msra.mxu0 0.0
    %775 = vmatprep.subr.mxu0 0.0
    %776 = vmatpush1.msra.mxu0 0.0
    %777 = vmatprep.subr.mxu0 0.0
    %778 = vmatpush1.msra.mxu0 0.0
    %779 = vmatprep.subr.mxu0 0.0
    %780 = vmatpush1.msra.mxu0 0.0
    %781 = vmatprep.subr.mxu0 0.0
    %782 = vmatpush1.msra.mxu0 0.0
    %783 = vmatprep.subr.mxu0 0.0
    %784 = vmatpush1.msra.mxu0 0.0
    %785 = vmatprep.subr.mxu0 0.0
    %786 = vmatpush1.msra.mxu0 0.0
    %787 = vmatprep.subr.mxu0 0.0
    %788 = vmatpush1.msra.mxu0 0.0
    %789 = vmatprep.subr.mxu0 0.0
    %790 = vmatpush1.msra.mxu0 0.0
    %791 = vmatprep.subr.mxu0 0.0
    %792 = vmatpush1.msra.mxu0 0.0
    %793 = vmatprep.subr.mxu0 0.0
    %794 = vmatpush1.msra.mxu0 0.0
    %795 = vmatprep.subr.mxu0 0.0
    %796 = vmatpush1.msra.mxu0 0.0
    %797 = vmatprep.subr.mxu0 0.0
    %798 = vmatpush1.msra.mxu0 0.0
    %799 = vmatprep.subr.mxu0 0.0
    %800 = vmatpush1.msra.mxu0 0.0
    %801 = vmatprep.subr.mxu0 0.0
    %802 = vmatpush1.msra.mxu0 0.0
    %803 = vmatprep.subr.mxu0 0.0
    %804 = vmatpush1.msra.mxu0 0.0
    %805 = vmatprep.subr.mxu0 0.0
    %806 = vmatpush1.msra.mxu0 0.0
    %807 = vmatprep.subr.mxu0 0.0
    %808 = vmatpush1.msra.mxu0 0.0
    %809 = vmatprep.mubr.f32.mxu0 0.0
    %810 = vmatmul.mubr.f32.gmra.mrb[0].mxu0 %v601
    %v811 = vpop.f32.mrb[0].mxu0
    %v812 = vadd.f32 %v161, %v811
    %v813 = vpop.f32.mrb[0].mxu0
    %v814 = vadd.f32 %v165, %v813
    %815 = vdwg.mxu0
    %816 = vmatprep.subr.mxu0 %v88
    %817 = vmatpush1.msra.mxu0 %v87
    %818 = vmatprep.subr.mxu0 %v96
    %819 = vmatpush1.msra.mxu0 %v95
    %820 = vmatprep.subr.mxu0 %v104
    %821 = vmatpush1.msra.mxu0 %v103
    %822 = vmatprep.subr.mxu0 %v112
    %823 = vmatpush1.msra.mxu0 %v111
    %824 = vmatprep.subr.mxu0 0.0
    %825 = vmatpush1.msra.mxu0 0.0
    %826 = vmatprep.subr.mxu0 0.0
    %827 = vmatpush1.msra.mxu0 0.0
    %828 = vmatprep.subr.mxu0 0.0
    %829 = vmatpush1.msra.mxu0 0.0
    %830 = vmatprep.subr.mxu0 0.0
    %831 = vmatpush1.msra.mxu0 0.0
    %832 = vmatprep.subr.mxu0 0.0
    %833 = vmatpush1.msra.mxu0 0.0
    %834 = vmatprep.subr.mxu0 0.0
    %835 = vmatpush1.msra.mxu0 0.0
    %836 = vmatprep.subr.mxu0 0.0
    %837 = vmatpush1.msra.mxu0 0.0
    %838 = vmatprep.subr.mxu0 0.0
    %839 = vmatpush1.msra.mxu0 0.0
    %840 = vmatprep.subr.mxu0 0.0
    %841 = vmatpush1.msra.mxu0 0.0
    %842 = vmatprep.subr.mxu0 0.0
    %843 = vmatpush1.msra.mxu0 0.0
    %844 = vmatprep.subr.mxu0 0.0
    %845 = vmatpush1.msra.mxu0 0.0
    %846 = vmatprep.subr.mxu0 0.0
    %847 = vmatpush1.msra.mxu0 0.0
    %848 = vmatprep.subr.mxu0 0.0
    %849 = vmatpush1.msra.mxu0 0.0
    %850 = vmatprep.subr.mxu0 0.0
    %851 = vmatpush1.msra.mxu0 0.0
    %852 = vmatprep.subr.mxu0 0.0
    %853 = vmatpush1.msra.mxu0 0.0
    %854 = vmatprep.subr.mxu0 0.0
    %855 = vmatpush1.msra.mxu0 0.0
    %856 = vmatprep.subr.mxu0 0.0
    %857 = vmatpush1.msra.mxu0 0.0
    %858 = vmatprep.subr.mxu0 0.0
    %859 = vmatpush1.msra.mxu0 0.0
    %860 = vmatprep.subr.mxu0 0.0
    %861 = vmatpush1.msra.mxu0 0.0
    %862 = vmatprep.subr.mxu0 0.0
    %863 = vmatpush1.msra.mxu0 0.0
    %864 = vmatprep.subr.mxu0 0.0
    %865 = vmatpush1.msra.mxu0 0.0
    %866 = vmatprep.subr.mxu0 0.0
    %867 = vmatpush1.msra.mxu0 0.0
    %868 = vmatprep.subr.mxu0 0.0
    %869 = vmatpush1.msra.mxu0 0.0
    %870 = vmatprep.subr.mxu0 0.0
    %871 = vmatpush1.msra.mxu0 0.0
    %872 = vmatprep.subr.mxu0 0.0
    %873 = vmatpush1.msra.mxu0 0.0
    %874 = vmatprep.subr.mxu0 0.0
    %875 = vmatpush1.msra.mxu0 0.0
    %876 = vmatprep.subr.mxu0 0.0
    %877 = vmatpush1.msra.mxu0 0.0
    %878 = vmatprep.subr.mxu0 0.0
    %879 = vmatpush1.msra.mxu0 0.0
    %880 = vmatprep.mubr.f32.mxu0 0.0
    %881 = vmatmul.mubr.f32.gmra.mrb[0].mxu0 %v601
    %v882 = vpop.f32.mrb[0].mxu0
    %v883 = vadd.f32 %v169, %v882
    %v884 = vpop.f32.mrb[0].mxu0
    %v885 = vadd.f32 %v173, %v884
    %886 = vdwg.mxu0
    %v895 = vcombine.low %v670, %v672
    %v896 = vcombine.low %v741, %v743
    %v897 = vcombine.low %v812, %v814
    %v898 = vcombine.low %v883, %v885
    %v900 = vunpack.c.l.s4 1966171168
    %v901 = vunpack.c.0.s8 %v900
    %v902 = vlaneseq
    %v903 = vshrl.u32 %v902, 7
    %v904 = vsub.s32 %v901, %v903
    %v905 = vrot.slane %v895, %v904
    %v907 = vunpack.c.l.s4 1966171168
    %v908 = vunpack.c.0.s8 %v907
    %v909 = vlaneseq
    %v910 = vshrl.u32 %v909, 7
    %v911 = vsub.s32 %v908, %v910
    %v912 = vrot.slane %v896, %v911
    %v914 = vunpack.c.l.s4 1966171168
    %v915 = vunpack.c.0.s8 %v914
    %v916 = vlaneseq
    %v917 = vshrl.u32 %v916, 7
    %v918 = vsub.s32 %v915, %v917
    %v919 = vrot.slane %v897, %v918
    %v921 = vunpack.c.l.s4 1966171168
    %v922 = vunpack.c.0.s8 %v921
    %v923 = vlaneseq
    %v924 = vshrl.u32 %v923, 7
    %v925 = vsub.s32 %v922, %v924
    %v926 = vrot.slane %v898, %v925
    %v927 = vcombine.low %v905, %v912
    %v928 = vcombine.low %v919, %v926
    %v930 = vunpack.c.l.s4 1966171168
    %v931 = vunpack.c.0.s8 %v930
    %v932 = vlaneseq
    %v933 = vshrl.u32 %v932, 7
    %v934 = vsub.s32 %v931, %v933
    %v935 = vrot.slane %v927, %v934
    %v937 = vunpack.c.l.s4 1966171168
    %v938 = vunpack.c.0.s8 %v937
    %v939 = vlaneseq
    %v940 = vshrl.u32 %v939, 7
    %v941 = vsub.s32 %v938, %v940
    %v942 = vrot.slane %v928, %v941
    %v943 = vcombine.low %v935, %v942
    %945 = vst [vmem:[#allocation13] sm:$0xff] %v943
    %946 = vmatprep.subr.mxu0 0.0
    %947 = vmatpush1.msra.mxu0 %v114
    %948 = vmatprep.subr.mxu0 0.0
    %949 = vmatpush1.msra.mxu0 %v115
    %950 = vmatprep.subr.mxu0 0.0
    %951 = vmatpush1.msra.mxu0 %v116
    %952 = vmatprep.subr.mxu0 0.0
    %953 = vmatpush1.msra.mxu0 %v117
    %954 = vmatprep.subr.mxu0 0.0
    %955 = vmatpush1.msra.mxu0 0.0
    %956 = vmatprep.subr.mxu0 0.0
    %957 = vmatpush1.msra.mxu0 0.0
    %958 = vmatprep.subr.mxu0 0.0
    %959 = vmatpush1.msra.mxu0 0.0
    %960 = vmatprep.subr.mxu0 0.0
    %961 = vmatpush1.msra.mxu0 0.0
    %962 = vmatprep.subr.mxu0 0.0
    %963 = vmatpush1.msra.mxu0 0.0
    %964 = vmatprep.subr.mxu0 0.0
    %965 = vmatpush1.msra.mxu0 0.0
    %966 = vmatprep.subr.mxu0 0.0
    %967 = vmatpush1.msra.mxu0 0.0
    %968 = vmatprep.subr.mxu0 0.0
    %969 = vmatpush1.msra.mxu0 0.0
    %970 = vmatprep.subr.mxu0 0.0
    %971 = vmatpush1.msra.mxu0 0.0
    %972 = vmatprep.subr.mxu0 0.0
    %973 = vmatpush1.msra.mxu0 0.0
    %974 = vmatprep.subr.mxu0 0.0
    %975 = vmatpush1.msra.mxu0 0.0
    %976 = vmatprep.subr.mxu0 0.0
    %977 = vmatpush1.msra.mxu0 0.0
    %978 = vmatprep.subr.mxu0 0.0
    %979 = vmatpush1.msra.mxu0 0.0
    %980 = vmatprep.subr.mxu0 0.0
    %981 = vmatpush1.msra.mxu0 0.0
    %982 = vmatprep.subr.mxu0 0.0
    %983 = vmatpush1.msra.mxu0 0.0
    %984 = vmatprep.subr.mxu0 0.0
    %985 = vmatpush1.msra.mxu0 0.0
    %986 = vmatprep.subr.mxu0 0.0
    %987 = vmatpush1.msra.mxu0 0.0
    %988 = vmatprep.subr.mxu0 0.0
    %989 = vmatpush1.msra.mxu0 0.0
    %990 = vmatprep.subr.mxu0 0.0
    %991 = vmatpush1.msra.mxu0 0.0
    %992 = vmatprep.subr.mxu0 0.0
    %993 = vmatpush1.msra.mxu0 0.0
    %994 = vmatprep.subr.mxu0 0.0
    %995 = vmatpush1.msra.mxu0 0.0
    %996 = vmatprep.subr.mxu0 0.0
    %997 = vmatpush1.msra.mxu0 0.0
    %998 = vmatprep.subr.mxu0 0.0
    %999 = vmatpush1.msra.mxu0 0.0
    %1000 = vmatprep.subr.mxu0 0.0
    %1001 = vmatpush1.msra.mxu0 0.0
    %1002 = vmatprep.subr.mxu0 0.0
    %1003 = vmatpush1.msra.mxu0 0.0
    %1004 = vmatprep.subr.mxu0 0.0
    %1005 = vmatpush1.msra.mxu0 0.0
    %1006 = vmatprep.subr.mxu0 0.0
    %1007 = vmatpush1.msra.mxu0 0.0
    %1008 = vmatprep.subr.mxu0 0.0
    %1009 = vmatpush1.msra.mxu0 0.0
    %1010 = vmatprep.mubr.f32.mxu0 0.0
    %1011 = vmatmul.mubr.f32.gmra.mrb[0].mxu0 %v601
    %v1012 = vpop.f32.mrb[0].mxu0
    %v1013 = vadd.f32 %v118, %v1012
    %v1014 = vpop.f32.mrb[0].mxu0
    %1015 = vdwg.mxu0
    %1016 = vst.msk [vmem:[#allocation14] sm:$0x1] %vm598, %v1013
    // Predicated region
    $region42: #{tpu_custom_call.1} parent=1 // pred_check
      _
    $region43: #{tpu_custom_call.1} parent=1 // pred_check_branch
      %1018 = sbr.rel (0) target = $region45
    $region44: #{tpu_custom_call.1} parent=1 // pred_region
      %s1020 = ssub.s32 128, 128
      %1021 = vsyncadd [#allocation4], %s1020
      %s1023 = sshll.u32 [#allocation10], 4
      %s1024 = int_to_ptr.vmem [resolvable:$true] %s1023
      %1026 = dma.vmem_to_hbm [thread:$0]  %s1024, 128, %s6, [#allocation4]
    $region45: #{tpu_custom_call.1} parent=1 // pred_fallthru
      _
    // Predicated region
    $region46: #{tpu_custom_call.1} parent=1 // pred_check
      _
    $region47: #{tpu_custom_call.1} parent=1 // pred_check_branch
      %1028 = sbr.rel (0) target = $region49
    $region48: #{tpu_custom_call.1} parent=1 // pred_region
      %s1030 = ssub.s32 16, 16
      %1031 = vsyncadd [#allocation12], %s1030
      %s1033 = sshll.u32 [#allocation11], 4
      %s1034 = int_to_ptr.vmem [resolvable:$true] %s1033
      %1036 = dma.vmem_to_hbm [thread:$0]  %s1034, 16, %s7, [#allocation12]
    $region49: #{tpu_custom_call.1} parent=1 // pred_fallthru
      _
    // Predicated region
    $region50: #{tpu_custom_call.1} parent=1 // pred_check
      _
    $region51: #{tpu_custom_call.1} parent=1 // pred_check_branch
      %1038 = sbr.rel (0) target = $region53
    $region52: #{tpu_custom_call.1} parent=1 // pred_region
      %s1040 = ssub.s32 128, 128
      %1041 = vsyncadd [#allocation12], %s1040
      %s1043 = sshll.u32 [#allocation13], 4
      %s1044 = int_to_ptr.vmem [resolvable:$true] %s1043
      %1046 = dma.vmem_to_hbm [thread:$0]  %s1044, 128, %s8, [#allocation12]
    $region53: #{tpu_custom_call.1} parent=1 // pred_fallthru
      _
    // Predicated region
    $region54: #{tpu_custom_call.1} parent=1 // pred_check
      _
    $region55: #{tpu_custom_call.1} parent=1 // pred_check_branch
      %1048 = sbr.rel (0) target = $region57
    $region56: #{tpu_custom_call.1} parent=1 // pred_region
      %s1050 = ssub.s32 16, 16
      %1051 = vsyncadd [#allocation15], %s1050
      %s1053 = sshll.u32 [#allocation14], 4
      %s1054 = int_to_ptr.vmem [resolvable:$true] %s1053
      %1056 = dma.vmem_to_hbm [thread:$0]  %s1054, 16, %s9, [#allocation15]
    $region57: #{tpu_custom_call.1} parent=1 // pred_fallthru
      _
    // Predicated region
    $region58: #{tpu_custom_call.1} parent=1 // pred_check
      _
    $region59: #{tpu_custom_call.1} parent=1 // pred_check_branch
      %1058 = sbr.rel (0) target = $region61
    $region60: #{tpu_custom_call.1} parent=1 // pred_region
      %1059 = dma.done [#allocation4], 128
    $region61: #{tpu_custom_call.1} parent=1 // pred_fallthru
      _
    // Predicated region
    $region62: #{tpu_custom_call.1} parent=1 // pred_check
      _
    $region63: #{tpu_custom_call.1} parent=1 // pred_check_branch
      %1061 = sbr.rel (0) target = $region65
    $region64: #{tpu_custom_call.1} parent=1 // pred_region
      %1062 = dma.done [#allocation12], 16
    $region65: #{tpu_custom_call.1} parent=1 // pred_fallthru
      _
    // Predicated region
    $region66: #{tpu_custom_call.1} parent=1 // pred_check
      _
    $region67: #{tpu_custom_call.1} parent=1 // pred_check_branch
      %1064 = sbr.rel (0) target = $region69
    $region68: #{tpu_custom_call.1} parent=1 // pred_region
      %1065 = dma.done [#allocation12], 128
    $region69: #{tpu_custom_call.1} parent=1 // pred_fallthru
      _
    // Predicated region
    $region70: #{tpu_custom_call.1} parent=1 // pred_check
      _
    $region71: #{tpu_custom_call.1} parent=1 // pred_check_branch
      %1067 = sbr.rel (0) target = $region73
    $region72: #{tpu_custom_call.1} parent=1 // pred_region
      %1068 = dma.done [#allocation15], 16
    $region73: #{tpu_custom_call.1} parent=1 // pred_fallthru
      _
    %1069 = vsyncpa [#allocation3], 1
    %1070 = vsyncpa [#allocation6], 1
    %1071 = vsyncpa [#allocation9], 1
    %1072 = vsyncpa [#allocation4], 1
    %1073 = vsyncpa [#allocation12], 1
    %1074 = vsyncpa [#allocation15], 1

</llo_original>
